<compile_context>
chip_gen: v7x
topology: tpu7x:2x2x1
jax: 0.10.0
libtpu: 0.0.40
codegen_flags: <defaults>
</compile_context>

<pallas_src>
import functools

import jax
import jax.numpy as jnp
from jax.experimental import pallas as pl
from jax.experimental.pallas import tpu as pltpu


def _round_up(x: int, m: int) -> int:
    return ((x + m - 1) // m) * m


def _label_smooth_reference(logits, target, smoothing):
    # Pure-JAX reference mirroring the PyTorch module exactly.
    log_prob = jax.nn.log_softmax(logits.astype(jnp.float32), axis=-1)
    n, c = logits.shape
    weight = jnp.full((n, c), smoothing / (c - 1.0), dtype=jnp.float32)
    weight = weight.at[jnp.arange(n), target].set(1.0 - smoothing)
    return jnp.mean(jnp.sum(-weight * log_prob, axis=-1))


def _label_smooth_kernel(x_ref, t_ref, o_ref, acc_ref, *,
                         smoothing: float, n_valid: int, tile_n: int,
                         tiles_per_part: int):
    p = pl.program_id(0)          # batch partition (megacore-parallel axis)
    i = pl.program_id(1)          # tile within the partition (reduction axis)

    @pl.when(i == 0)
    def _init():
        acc_ref[...] = jnp.zeros_like(acc_ref)

    x = x_ref[...].astype(jnp.float32)          # (tile_n, C) logits tile
    tn, c = x.shape

    # Numerically stable log-softmax pieces (no full log_prob materialized).
    m = jnp.max(x, axis=-1, keepdims=True)                            # (tn, 1)
    shifted = x - m                                                   # (tn, C)
    lse = jnp.log(jnp.sum(jnp.exp(shifted), axis=-1, keepdims=True))  # (tn, 1)

    # sum(log_prob) over classes = sum(shifted) - C * lse.
    sum_logprob = jnp.sum(shifted, axis=-1, keepdims=True) - jnp.float32(c) * lse

    # log_prob at the target class via masked lane sum (scatter-free gather).
    cols = jax.lax.broadcasted_iota(jnp.int32, (tn, c), 1)
    tgt = t_ref[...]                                                  # (tn, 1)
    shifted_at_tgt = jnp.sum(jnp.where(cols == tgt, shifted, 0.0),
                             axis=-1, keepdims=True)
    logprob_at_tgt = shifted_at_tgt - lse

    # Smoothed weights reduced to two scalars (guard C==1 division by zero).
    off = (smoothing / (c - 1.0)) if c > 1 else 0.0
    on = 1.0 - smoothing
    per_row = -(jnp.float32(off) * sum_logprob
                + jnp.float32(on - off) * logprob_at_tgt)             # (tn, 1)

    # Mask rows beyond the true batch (edge-tile clipping / clamped tiles).
    rows = (p * tiles_per_part + i) * tile_n + jax.lax.broadcasted_iota(
        jnp.int32, (tn, 1), 0)
    per_row = jnp.where(rows < n_valid, per_row, 0.0)

    acc_ref[...] += jnp.sum(per_row, axis=0, keepdims=True)           # (1, 1)

    @pl.when(i == pl.num_programs(1) - 1)
    def _finalize():
        # Lane-dense partial-sum block for this batch partition.
        o_ref[...] = jnp.broadcast_to(acc_ref[...].reshape(1, 1, 1), o_ref.shape)


def label_smooth_loss(logits, target, smoothing: float = 0.0, *,
                      force_pallas: bool = False):
    """Pallas implementation of LabelSmoothLoss.forward(input, target)."""
    n, c = logits.shape
    itemsize = jnp.dtype(logits.dtype).itemsize

    # Sub-lane-width class axis: every vreg row would use <128 lanes and the
    # fixed pallas_call overhead dominates; XLA's fused softmax-CE wins here.
    if c < 128 and not force_pallas:
        return _label_smooth_reference(logits, target, smoothing)

    try:
        vmem_cap = int(pltpu.get_tpu_info().vmem_capacity_bytes)
    except Exception:  # pragma: no cover - conservative fallback (v7x-sized)
        vmem_cap = 64 * 1024 * 1024

    # Vocab-scale C: even an 8-row double-buffered tile would not fit VMEM.
    # TODO(synk): tile the class axis with an online logsumexp carry instead.
    if 2 * 8 * c * itemsize > vmem_cap // 2:
        return _label_smooth_reference(logits, target, smoothing)

    # Per-buffer byte budget (Pallas double-buffers the logits stream):
    # ~8 MiB on v5e/v6e (128 MiB VMEM), ~5.3 MiB on v7x (64 MiB).
    buf_budget = min(8 * 1024 * 1024, vmem_cap // 12)
    rows_budget = max(8, ((buf_budget // max(1, c * itemsize)) // 8) * 8)

    num_parts = 2  # leading "parallel" axis -> both TensorCores on v7x
    if n < 8:
        tile_n = n                     # single block equal to the full batch dim
    else:
        tile_n = max(8, min(rows_budget,
                            (n // 8) * 8,
                            _round_up(pl.cdiv(n, num_parts), 8)))
    num_blocks = pl.cdiv(n, tile_n)
    num_parts = min(num_parts, num_blocks)
    tiles_per_part = pl.cdiv(num_blocks, num_parts)
    last_block = num_blocks - 1

    tgt = target.astype(jnp.int32).reshape(n, 1)

    # Clamp the block index so over-hanging grid slots re-read a valid block;
    # their rows are >= n and get zeroed by the in-kernel mask.
    def block_map(p, i):
        return (jnp.minimum(p * tiles_per_part + i, last_block), 0)

    kernel = functools.partial(_label_smooth_kernel,
                               smoothing=float(smoothing),
                               n_valid=int(n),
                               tile_n=int(tile_n),
                               tiles_per_part=int(tiles_per_part))

    needed_vmem = (2 * tile_n * c * itemsize   # double-buffered logits tiles
                   + 2 * tile_n * 4            # double-buffered target tiles
                   + 2 * 8 * 128 * 4           # output block
                   + (2 << 20))                # scratch / internal slack
    vmem_limit = int(min(vmem_cap, max(needed_vmem, 16 << 20)))

    partials = pl.pallas_call(
        kernel,
        out_shape=jax.ShapeDtypeStruct((num_parts, 8, 128), jnp.float32),
        grid=(num_parts, tiles_per_part),
        in_specs=[
            pl.BlockSpec((tile_n, c), block_map),
            pl.BlockSpec((tile_n, 1), block_map),
        ],
        out_specs=pl.BlockSpec((1, 8, 128), lambda p, i: (p, 0, 0)),
        scratch_shapes=[pltpu.VMEM((1, 1), jnp.float32)],
        compiler_params=pltpu.CompilerParams(
            dimension_semantics=("parallel", "arbitrary"),
            vmem_limit_bytes=vmem_limit),
        cost_estimate=pl.CostEstimate(
            flops=6 * n * c,
            transcendentals=n * c,
            bytes_accessed=n * c * itemsize + n * 4 + num_parts * 8 * 128 * 4),
    )(logits, tgt)

    return jnp.sum(partials[:, 0, 0]) * jnp.float32(1.0 / n)


if __name__ == "__main__":
    key = jax.random.PRNGKey(0)
    k_x, k_t = jax.random.split(key)
    smoothing = 0.1

    # Primary case: lane-dense class axis, batch not a multiple of the tile
    # (exercises edge-tile clipping without any wrapper padding).
    N, C = 13, 128
    x = jax.random.normal(k_x, (N, C), dtype=jnp.float32)
    t = jax.random.randint(k_t, (N,), 0, C, dtype=jnp.int32)
    loss = jax.block_until_ready(label_smooth_loss(x, t, smoothing=smoothing))
    ref = _label_smooth_reference(x, t, smoothing)
    assert jnp.allclose(loss, ref, rtol=1e-5, atol=1e-5), (loss, ref)

    # Tiny CIFAR-like class count forced through the Pallas path (smoothing=0
    # reduces to plain cross-entropy).
    N2, C2 = 8, 16
    x2 = jax.random.normal(k_x, (N2, C2), dtype=jnp.float32)
    t2 = jax.random.randint(k_t, (N2,), 0, C2, dtype=jnp.int32)
    loss2 = jax.block_until_ready(
        label_smooth_loss(x2, t2, smoothing=0.0, force_pallas=True))
    ref2 = _label_smooth_reference(x2, t2, 0.0)
    assert jnp.allclose(loss2, ref2, rtol=1e-5, atol=1e-5), (loss2, ref2)

    # Default dispatch for sub-lane-width C goes to XLA's fused softmax-CE.
    loss3 = jax.block_until_ready(label_smooth_loss(x2, t2, smoothing=0.3))
    ref3 = _label_smooth_reference(x2, t2, 0.3)
    assert jnp.allclose(loss3, ref3, rtol=1e-5, atol=1e-5), (loss3, ref3)

    print("KERNEL_OK")
</pallas_src>

<mosaic_0001>
module attributes {stable_mosaic.version = 11 : i64} {
  func.func @_label_smooth_kernel(%arg0: i32, %arg1: i32, %arg2: memref<8x128xf32, #tpu.memory_space<vmem>>, %arg3: memref<8x1xi32, #tpu.memory_space<vmem>>, %arg4: memref<1x8x128xf32, #tpu.memory_space<vmem>>, %arg5: memref<1x1xf32, #tpu.memory_space<vmem>>) attributes {dimension_semantics = [#tpu.dimension_semantics<parallel>, #tpu.dimension_semantics<arbitrary>], iteration_bounds = array<i64: 2, 1>, scalar_prefetch = 0 : i64, scratch_operands = 1 : i64, tpu.core_type = #tpu.core_type<tc>, window_params = [{transform_indices = @transform_0, window_bounds = array<i64: 8, 128>}, {transform_indices = @transform_1, window_bounds = array<i64: 8, 1>}, {transform_indices = @transform_2, window_bounds = array<i64: 1, 8, 128>}]} {
    %c0_i32 = arith.constant 0 : i32
    %0 = arith.cmpi eq, %arg1, %c0_i32 : i32
    %1 = arith.extui %0 : i1 to i32
    %c0_i32_0 = arith.constant 0 : i32
    %2 = arith.cmpi ne, %1, %c0_i32_0 : i32
    scf.if %2 {
      %cst_20 = arith.constant 0.000000e+00 : f32
      %51 = vector.broadcast %cst_20 : f32 to vector<1x1xf32>
      %c0_21 = arith.constant 0 : index
      %c0_22 = arith.constant 0 : index
      %52 = vector.load %arg5[%c0_21, %c0_22] : memref<1x1xf32, #tpu.memory_space<vmem>>, vector<1x1xf32>
      tpu.vector_store %arg5[%c0_21, %c0_22], %51 {strides = array<i32>} : memref<1x1xf32, #tpu.memory_space<vmem>>, vector<1x1xf32>,
    } else {
    }
    %c0 = arith.constant 0 : index
    %c0_1 = arith.constant 0 : index
    %3 = vector.load %arg2[%c0, %c0_1] : memref<8x128xf32, #tpu.memory_space<vmem>>, vector<8x128xf32>
    %cst = arith.constant dense<0xFF800000> : vector<8xf32>
    %4 = vector.multi_reduction <maximumf>, %3, %cst [1] : vector<8x128xf32> to vector<8xf32>
    %5 = vector.shape_cast %4 : vector<8xf32> to vector<8x1xf32>
    %6 = vector.broadcast %5 : vector<8x1xf32> to vector<8x128xf32>
    %7 = arith.subf %3, %6 : vector<8x128xf32>
    %8 = math.exp %7 : vector<8x128xf32>
    %cst_2 = arith.constant dense<0.000000e+00> : vector<8xf32>
    %9 = vector.multi_reduction <add>, %8, %cst_2 [1] : vector<8x128xf32> to vector<8xf32>
    %10 = vector.shape_cast %9 : vector<8xf32> to vector<8x1xf32>
    %11 = math.log %10 : vector<8x1xf32>
    %cst_3 = arith.constant dense<0.000000e+00> : vector<8xf32>
    %12 = vector.multi_reduction <add>, %7, %cst_3 [1] : vector<8x128xf32> to vector<8xf32>
    %13 = vector.shape_cast %12 : vector<8xf32> to vector<8x1xf32>
    %cst_4 = arith.constant 1.280000e+02 : f32
    %14 = vector.broadcast %cst_4 : f32 to vector<8x1xf32>
    %15 = arith.mulf %14, %11 : vector<8x1xf32>
    %16 = arith.subf %13, %15 : vector<8x1xf32>
    %17 = tpu.iota {dimensions = array<i32: 1>} : vector<8x128xi32>
    %c0_5 = arith.constant 0 : index
    %c0_6 = arith.constant 0 : index
    %18 = vector.load %arg3[%c0_5, %c0_6] : memref<8x1xi32, #tpu.memory_space<vmem>>, vector<8x1xi32>
    %19 = vector.broadcast %18 : vector<8x1xi32> to vector<8x128xi32>
    %20 = arith.cmpi eq, %17, %19 : vector<8x128xi32>
    %cst_7 = arith.constant 0.000000e+00 : f32
    %21 = vector.broadcast %cst_7 : f32 to vector<8x128xf32>
    %22 = arith.select %20, %7, %21 : vector<8x128xi1>, vector<8x128xf32>
    %cst_8 = arith.constant dense<0.000000e+00> : vector<8xf32>
    %23 = vector.multi_reduction <add>, %22, %cst_8 [1] : vector<8x128xf32> to vector<8xf32>
    %24 = vector.shape_cast %23 : vector<8xf32> to vector<8x1xf32>
    %25 = arith.subf %24, %11 : vector<8x1xf32>
    %cst_9 = arith.constant 7.87401571E-4 : f32
    %26 = vector.broadcast %cst_9 : f32 to vector<8x1xf32>
    %27 = arith.mulf %26, %16 : vector<8x1xf32>
    %cst_10 = arith.constant 0.899212599 : f32
    %28 = vector.broadcast %cst_10 : f32 to vector<8x1xf32>
    %29 = arith.mulf %28, %25 : vector<8x1xf32>
    %30 = arith.addf %27, %29 : vector<8x1xf32>
    %cst_11 = arith.constant 0.000000e+00 : f32
    %31 = vector.broadcast %cst_11 : f32 to vector<8x1xf32>
    %32 = arith.subf %31, %30 : vector<8x1xf32>
    %c1_i32 = arith.constant 1 : i32
    %33 = arith.muli %arg0, %c1_i32 : i32
    %34 = arith.addi %33, %arg1 : i32
    %c8_i32 = arith.constant 8 : i32
    %35 = arith.muli %34, %c8_i32 : i32
    %36 = tpu.iota {dimensions = array<i32: 0>} : vector<8x1xi32>
    %37 = vector.broadcast %35 : i32 to vector<8x1xi32>
    %38 = arith.addi %37, %36 : vector<8x1xi32>
    %c13_i32 = arith.constant 13 : i32
    %39 = vector.broadcast %c13_i32 : i32 to vector<8x1xi32>
    %40 = arith.cmpi slt, %38, %39 : vector<8x1xi32>
    %cst_12 = arith.constant 0.000000e+00 : f32
    %41 = vector.broadcast %cst_12 : f32 to vector<8x1xf32>
    %42 = arith.select %40, %32, %41 : vector<8x1xi1>, vector<8x1xf32>
    %c0_13 = arith.constant 0 : index
    %c0_14 = arith.constant 0 : index
    %43 = vector.load %arg5[%c0_13, %c0_14] : memref<1x1xf32, #tpu.memory_space<vmem>>, vector<1x1xf32>
    %cst_15 = arith.constant dense<0.000000e+00> : vector<1xf32>
    %44 = vector.multi_reduction <add>, %42, %cst_15 [0] : vector<8x1xf32> to vector<1xf32>
    %45 = vector.shape_cast %44 : vector<1xf32> to vector<1x1xf32>
    %46 = arith.addf %43, %45 : vector<1x1xf32>
    %c0_16 = arith.constant 0 : index
    %c0_17 = arith.constant 0 : index
    %47 = vector.load %arg5[%c0_16, %c0_17] : memref<1x1xf32, #tpu.memory_space<vmem>>, vector<1x1xf32>
    tpu.vector_store %arg5[%c0_16, %c0_17], %46 {strides = array<i32>} : memref<1x1xf32, #tpu.memory_space<vmem>>, vector<1x1xf32>,
    %c0_i32_18 = arith.constant 0 : i32
    %48 = arith.cmpi eq, %arg1, %c0_i32_18 : i32
    %49 = arith.extui %48 : i1 to i32
    %c0_i32_19 = arith.constant 0 : i32
    %50 = arith.cmpi ne, %49, %c0_i32_19 : i32
    scf.if %50 {
      %c0_20 = arith.constant 0 : index
      %c0_21 = arith.constant 0 : index
      %51 = vector.load %arg5[%c0_20, %c0_21] : memref<1x1xf32, #tpu.memory_space<vmem>>, vector<1x1xf32>
      %52 = vector.shape_cast %51 : vector<1x1xf32> to vector<1x1x1xf32>
      %53 = vector.shape_cast %52 : vector<1x1x1xf32> to vector<1x1x1xf32>
      %54 = vector.broadcast %53 : vector<1x1x1xf32> to vector<1x8x128xf32>
      %c0_22 = arith.constant 0 : index
      %c0_23 = arith.constant 0 : index
      %c0_24 = arith.constant 0 : index
      %55 = vector.load %arg4[%c0_22, %c0_23, %c0_24] : memref<1x8x128xf32, #tpu.memory_space<vmem>>, vector<1x8x128xf32>
      tpu.vector_store %arg4[%c0_22, %c0_23, %c0_24], %54 {strides = array<i32>} : memref<1x8x128xf32, #tpu.memory_space<vmem>>, vector<1x8x128xf32>,
    } else {
    }
    return
  }
  func.func @transform_0(%arg0: i32, %arg1: i32) -> (i32, i32) {
    %c1_i32 = arith.constant 1 : i32
    %0 = arith.muli %arg0, %c1_i32 : i32
    %1 = arith.addi %0, %arg1 : i32
    %c1_i32_0 = arith.constant 1 : i32
    %2 = arith.minsi %1, %c1_i32_0 : i32
    %c0_i32 = arith.constant 0 : i32
    %c0_i32_1 = arith.constant 0 : i32
    return %2, %c0_i32 : i32, i32
  }
  func.func @transform_1(%arg0: i32, %arg1: i32) -> (i32, i32) {
    %c1_i32 = arith.constant 1 : i32
    %0 = arith.muli %arg0, %c1_i32 : i32
    %1 = arith.addi %0, %arg1 : i32
    %c1_i32_0 = arith.constant 1 : i32
    %2 = arith.minsi %1, %c1_i32_0 : i32
    %c0_i32 = arith.constant 0 : i32
    %c0_i32_1 = arith.constant 0 : i32
    return %2, %c0_i32 : i32, i32
  }
  func.func @transform_2(%arg0: i32, %arg1: i32) -> (i32, i32, i32) {
    %c0_i32 = arith.constant 0 : i32
    %c0_i32_0 = arith.constant 0 : i32
    %c0_i32_1 = arith.constant 0 : i32
    return %arg0, %c0_i32, %c0_i32_0 : i32, i32, i32
  }
}

</mosaic_0001>

<llo_original>
// kernel: tpu_custom_call.1
$region0: #{tpu_custom_call.1}
  #allocation0 [shape = 'u32[]', space=smem, size = 0x4, offset = 0x4, fixed_abs, tag = 'smem constant byte address 0x4 - core index']
  #allocation1 [shape = 'u32[144,128]{1,0:T(1,128)}', space=vmem, size = 0x12000, scoped, tag = 'internal scratch']
  #allocation2 [shape = 'f32[1,1]{1,0:T(1,128)}', space=vmem, size = 0x200, scoped, tag = 'scratch operand']
  %s0 = inlined_call_operand.vmem [shape: f32[13,128], index: 0, kind: input, shape index: {}]
  %s1 = inlined_call_operand.vmem [shape: s32[13,1], index: 1, kind: input, shape index: {}]
  %s2 = inlined_call_operand.hbm [shape: f32[2,8,128], index: 2, kind: output, shape index: {}]
  %s3 = sld [smem:[#allocation0]]
  $region49: #{tpu_custom_call.1} parent=0
    _
  %s5 = ssub.s32 1, %s3
  %s6 = scalar_select 0, %s5, %s3
  $region1: #{tpu_custom_call.1} parent=0
    #allocation3 [shape = 'u8[8192]{0}', space=vmem, size = 0x2000, scoped, tag = 'output window, operand 0']
    #allocation4 [shape = 's32[2]{0}', space=sflag, size = 0x8, scoped, tag = 'scoped memory for tpu_custom_call.1']
    %7 = vsyncpa [#allocation4], 0
    %s8 = scalar_lea.sflag [#allocation4], 1
    %9 = vsyncpa %s8, 0
    loop: start=0, step=1, limit=4
    $region2: #{tpu_custom_call.1} parent=1 // loop_pre_header
      _
    $region3: #{tpu_custom_call.1} parent=1 // loop_header
      %s11 = sphi 0, %s15
      %p12 = scmp.ge.s32.totalorder %s11, 4
      %s18 = sphi 0, %s30
      %s19 = sphi 0, %s26
      %s20 = sphi 0, %s18
      %s21 = sphi 0, %s19
      %s22 = sphi 0, %s20
      %s23 = sphi 0, %s21
      %s39 = sphi 0, %s41
      %s42 = sphi 0, %s39
      %s43 = sphi 0, %s42
      %s59 = sphi 0, %s43
      %s71 = sphi 0, %s73
      %s74 = sphi 0, %s71
      %s75 = sphi 0, %s74
      %s91 = sphi 0, %s75
      %s97 = sphi 0, %s99
      %s100 = sphi 0, %s97
      %s101 = sphi 0, %s100
      %s117 = sphi 0, %s101
    $region4: #{tpu_custom_call.1} parent=1 // loop_header_branch
      %14 = sbr.rel (%p12) target = $region8
    $region5: #{tpu_custom_call.1} parent=1 // loop_body
      %s16 = ssub.s32 %s11, 1
      %s17 = ssub.s32 %s11, 2
      %s24 = sadd.s32 1, %s19
      %p25 = scmp.ge.s32.totalorder %s24, 1
      %s26 = scalar_select %p25, 0, %s24
      %s27 = sadd.s32 1, %s18
      %s28 = scalar_select %p25, %s27, %s18
      %p29 = scmp.ge.s32.totalorder %s28, 2
      %s30 = scalar_select %p29, 0, %s28
      %s31 = sadd.s32 %s18, %s19
      %p32 = scmp.lt.s32.totalorder %s31, 1
      %s33 = scalar_select %p32, %s31, 1
      %s34 = sadd.s32 %s30, %s26
      %p35 = scmp.lt.s32.totalorder %s34, 1
      %s36 = scalar_select %p35, %s34, 1
      %s37 = ssub.s32 %s33, %s36
      %p38 = scmp.eq.s32.totalorder %s37, 0
      %s40 = sadd.s32 %s39, 1
      %s41 = scalar_select %p38, %s39, %s40
      %p44 = pneg %p38
      %p45 = scmp.eq.s32.totalorder %s11, 1
      %p46 = por %p44, %p45
      %p47 = scmp.ne.s32.totalorder %s39, %s42
      %p48 = scmp.eq.s32.totalorder %s11, 0
      %p49 = por %p47, %p48
      %p50 = scmp.ne.s32.totalorder %s39, %s42
      %p51 = scmp.eq.s32.totalorder %s16, 1
      %p52 = por %p50, %p51
      %p53 = scmp.ne.s32.totalorder %s42, %s43
      %p54 = scmp.eq.s32.totalorder %s16, 0
      %p55 = por %p53, %p54
      %p56 = scmp.ne.s32.totalorder %s42, %s43
      %p57 = scmp.eq.s32.totalorder %s17, 1
      %p58 = por %p56, %p57
      %p60 = scmp.ne.s32.totalorder %s43, %s59
      %p61 = scmp.eq.s32.totalorder %s17, 0
      %p62 = por %p60, %p61
      %s63 = sadd.s32 %s18, %s19
      %p64 = scmp.lt.s32.totalorder %s63, 1
      %s65 = scalar_select %p64, %s63, 1
      %s66 = sadd.s32 %s30, %s26
      %p67 = scmp.lt.s32.totalorder %s66, 1
      %s68 = scalar_select %p67, %s66, 1
      %s69 = ssub.s32 %s65, %s68
      %p70 = scmp.eq.s32.totalorder %s69, 0
      %s72 = sadd.s32 %s71, 1
      %s73 = scalar_select %p70, %s71, %s72
      %p76 = pneg %p70
      %p77 = scmp.eq.s32.totalorder %s11, 1
      %p78 = por %p76, %p77
      %p79 = scmp.ne.s32.totalorder %s71, %s74
      %p80 = scmp.eq.s32.totalorder %s11, 0
      %p81 = por %p79, %p80
      %p82 = scmp.ne.s32.totalorder %s71, %s74
      %p83 = scmp.eq.s32.totalorder %s16, 1
      %p84 = por %p82, %p83
      %p85 = scmp.ne.s32.totalorder %s74, %s75
      %p86 = scmp.eq.s32.totalorder %s16, 0
      %p87 = por %p85, %p86
      %p88 = scmp.ne.s32.totalorder %s74, %s75
      %p89 = scmp.eq.s32.totalorder %s17, 1
      %p90 = por %p88, %p89
      %p92 = scmp.ne.s32.totalorder %s75, %s91
      %p93 = scmp.eq.s32.totalorder %s17, 0
      %p94 = por %p92, %p93
      %s95 = ssub.s32 %s18, %s30
      %p96 = scmp.eq.s32.totalorder %s95, 0
      %s98 = sadd.s32 %s97, 1
      %s99 = scalar_select %p96, %s97, %s98
      %p102 = pneg %p96
      %p103 = scmp.eq.s32.totalorder %s11, 1
      %p104 = por %p102, %p103
      %p105 = scmp.ne.s32.totalorder %s97, %s100
      %p106 = scmp.eq.s32.totalorder %s11, 0
      %p107 = por %p105, %p106
      %p108 = scmp.ne.s32.totalorder %s97, %s100
      %p109 = scmp.eq.s32.totalorder %s16, 1
      %p110 = por %p108, %p109
      %p111 = scmp.ne.s32.totalorder %s100, %s101
      %p112 = scmp.eq.s32.totalorder %s16, 0
      %p113 = por %p111, %p112
      %p114 = scmp.ne.s32.totalorder %s100, %s101
      %p115 = scmp.eq.s32.totalorder %s17, 1
      %p116 = por %p114, %p115
      %p118 = scmp.ne.s32.totalorder %s101, %s117
      %p119 = scmp.eq.s32.totalorder %s17, 0
      %p120 = por %p118, %p119
      %p121 = scmp.le.s32.totalorder 1, %s11
      %p122 = scmp.lt.s32.totalorder %s11, 3
      %p123 = pnand %p121, %p122
      %p124 = pneg %p123
      // Predicated region
      $region9: #{tpu_custom_call.1} parent=5 // pred_check
        _
      $region10: #{tpu_custom_call.1} parent=5 // pred_check_branch
        %126 = sbr.rel (%p123) target = $region12
      $region11: #{tpu_custom_call.1} parent=5 // pred_region
        %s127 = ssub.s32 %s11, 1
      $region12: #{tpu_custom_call.1} parent=5 // pred_fallthru
        _
      %p128 = scmp.lt.s32.totalorder %s11, 2
      // Predicated region
      $region13: #{tpu_custom_call.1} parent=5 // pred_check
        %p129 = pneg %p128
      $region14: #{tpu_custom_call.1} parent=5 // pred_check_branch
        %131 = sbr.rel (%p129) target = $region16
      $region15: #{tpu_custom_call.1} parent=5 // pred_region
        // Predicated region
        $region17: #{tpu_custom_call.1} parent=15 // pred_check
          %p132 = pneg %p49
        $region18: #{tpu_custom_call.1} parent=15 // pred_check_branch
          %134 = sbr.rel (%p132) target = $region20
        $region19: #{tpu_custom_call.1} parent=15 // pred_region
          %s135 = sadd.s32 %s18, %s19
          %p136 = scmp.lt.s32.totalorder %s135, 1
          %s137 = scalar_select %p136, %s135, 1
          %p138 = scmp.lt.s32.totalorder %s137, 1
          %s139 = scalar_select %p138, %s137, 1
          %s140 = smul.addr %s139, 8
          %s141 = scalar_lea.vmem %s0, %s140
          %s142 = sadd.s32 %s18, %s19
          %p143 = scmp.lt.s32.totalorder %s142, 1
          %s144 = scalar_select %p143, %s142, 1
        $region20: #{tpu_custom_call.1} parent=15 // pred_fallthru
          _
        // Predicated region
        $region21: #{tpu_custom_call.1} parent=15 // pred_check
          %p145 = pneg %p81
        $region22: #{tpu_custom_call.1} parent=15 // pred_check_branch
          %147 = sbr.rel (%p145) target = $region24
        $region23: #{tpu_custom_call.1} parent=15 // pred_region
          %s148 = sadd.s32 %s18, %s19
          %p149 = scmp.lt.s32.totalorder %s148, 1
          %s150 = scalar_select %p149, %s148, 1
          %p151 = scmp.lt.s32.totalorder %s150, 1
          %s152 = scalar_select %p151, %s150, 1
          %s153 = smul.addr %s152, 8
          %s154 = scalar_lea.vmem %s1, %s153
          %s155 = sadd.s32 %s18, %s19
          %p156 = scmp.lt.s32.totalorder %s155, 1
          %s157 = scalar_select %p156, %s155, 1
        $region24: #{tpu_custom_call.1} parent=15 // pred_fallthru
          _
      $region16: #{tpu_custom_call.1} parent=5 // pred_fallthru
        _
      %p158 = scmp.le.s32.totalorder 1, %s11
      %p159 = scmp.lt.s32.totalorder %s11, 3
      %p160 = pnand %p158, %p159
      %p161 = pneg %p160
      // Predicated region
      $region25: #{tpu_custom_call.1} parent=5 // pred_check
        _
      $region26: #{tpu_custom_call.1} parent=5 // pred_check_branch
        %163 = sbr.rel (%p160) target = $region28
      $region27: #{tpu_custom_call.1} parent=5 // pred_region
        %s164 = ssub.s32 %s11, 1
        %s165 = sadd.s32 %s20, %s21
        %p166 = scmp.lt.s32.totalorder %s165, 1
        %s167 = scalar_select %p166, %s165, 1
        %p168 = scmp.lt.s32.totalorder %s167, 1
        %s169 = scalar_select %p168, %s167, 1
        %s170 = smul.addr %s169, 8
        %s171 = scalar_lea.vmem %s0, %s170
        %p172 = pneg %p55
        %p173 = pneg %p52
        %s174 = sadd.s32 %s20, %s21
        %p175 = scmp.lt.s32.totalorder %s174, 1
        %s176 = scalar_select %p175, %s174, 1
        %p177 = scmp.lt.s32.totalorder %s176, 1
        %s178 = scalar_select %p177, %s176, 1
        %s179 = smul.addr %s178, 8
        %s180 = scalar_lea.vmem %s1, %s179
        %p181 = pneg %p87
        %p182 = pneg %p84
        %p183 = pneg %p113
        %p184 = pneg %p110
        %s185 = sand.u32 %s100, 1
        %s186 = scalar_lea.sflag [#allocation4], %s185
        %s187 = sand.u32 %s100, 1
        %s188 = smul.addr %s187, 8
        %s189 = scalar_lea.vmem [#allocation3], %s188
        %s190 = sadd.s32 %s20, %s21
        %p191 = scmp.lt.s32.totalorder %s190, 1
        %s192 = scalar_select %p191, %s190, 1
        %p193 = scmp.lt.s32.totalorder %s192, 1
        %s194 = scalar_select %p193, %s192, 1
        %s195 = smul.addr %s194, 8
        %s196 = scalar_lea.vmem %s0, %s195
        %s197 = sadd.s32 %s20, %s21
        %p198 = scmp.lt.s32.totalorder %s197, 1
        %s199 = scalar_select %p198, %s197, 1
        %s200 = sadd.s32 %s20, %s21
        %p201 = scmp.lt.s32.totalorder %s200, 1
        %s202 = scalar_select %p201, %s200, 1
        %p203 = scmp.lt.s32.totalorder %s202, 1
        %s204 = scalar_select %p203, %s202, 1
        %s205 = smul.addr %s204, 8
        %s206 = scalar_lea.vmem %s1, %s205
        %s207 = sadd.s32 %s20, %s21
        %p208 = scmp.lt.s32.totalorder %s207, 1
        %s209 = scalar_select %p208, %s207, 1
        %p210 = scmp.eq.s32.totalorder %s21, 0
        // Predicated region
        $region29: #{tpu_custom_call.1} parent=27 // pred_check
          %p211 = pneg %p210
        $region30: #{tpu_custom_call.1} parent=27 // pred_check_branch
          %213 = sbr.rel (%p211) target = $region32
        $region31: #{tpu_custom_call.1} parent=27 // pred_region
          %vm214 = vcmask 0
          %215 = vst.msk [vmem:[#allocation2] sm:$0x1] %vm214, 0.0
        $region32: #{tpu_custom_call.1} parent=27 // pred_fallthru
          _
        %v216 = vld [vmem:[%s196] sm:$0xff]
        %217 = vmax.xlane.f32.xlu0 %v216
        %v218 = vpop.xlane.xlu0 %217
        %v219 = vsub.f32 %v216, %v218
        %v220 = vmul.f32 %v219, 1.442695
        %v221 = vpow.pop %v220
        %222 = vadd.xlane.f32.xlu0 %v221
        %v223 = vpop.xlane.xlu0 %222
        %v224 = vlog2.pop %v223
        %v225 = vmul.f32 %v224, 0.6931472
        %226 = vadd.xlane.f32.xlu0 %v219
        %v227 = vpop.xlane.xlu0 %226
        %v228 = vmul.f32 %v225, 128.0
        %v229 = vsub.f32 %v227, %v228
        %v230 = vlaneseq
        %v231 = vand.u32 %v230, 127
        %v232 = vld [vmem:[%s206] sm:$0xff]
        %233 = vset.pattern.permute.xlu0 0
        %234 = vperm.xlu0 %233, %v232
        %v235 = vpop.permute.xlu0 %234
        %vm236 = vcmp.eq.s32.totalorder %v231, %v235
        %v237 = vsel %vm236, %v219, 0.0
        %238 = vadd.xlane.f32.xlu0 %v237
        %v239 = vpop.xlane.xlu0 %238
        %v240 = vsub.f32 %v239, %v225
        %v241 = vmul.f32 %v229, 0.0007874016
        %v242 = vmul.f32 %v240, 0.8992126
        %v243 = vadd.f32 %v241, %v242
        %v244 = vsub.f32 0.0, %v243
        %s245 = sadd.s32 %s20, %s21
        %s246 = smul.u32 %s245, 8
        %v247 = vlaneseq
        %v248 = vshrl.u32 %v247, 7
        %v249 = vstv %s246
        %v250 = vadd.s32 %v249, %v248
        %vm251 = vcmp.lt.s32.totalorder %v250, 13
        %v252 = vsel %vm251, %v244, 0.0
        %v253 = vld [vmem:[#allocation2] sm:$0x1]
        %v254 = vrot.slane %v252, 4
        %v255 = vadd.f32 %v252, %v254
        %v256 = vrot.slane %v255, 2
        %v257 = vadd.f32 %v255, %v256
        %v258 = vrot.slane %v257, 1
        %v259 = vadd.f32 %v257, %v258
        %v260 = vadd.f32 %v253, %v259
        %vm261 = vcmask 0
        %262 = vst.msk [vmem:[#allocation2] sm:$0x1] %vm261, %v260
        // Predicated region
        $region33: #{tpu_custom_call.1} parent=27 // pred_check
          %p263 = pneg %p210
        $region34: #{tpu_custom_call.1} parent=27 // pred_check_branch
          %265 = sbr.rel (%p263) target = $region36
        $region35: #{tpu_custom_call.1} parent=27 // pred_region
          %v266 = vld [vmem:[#allocation2] sm:$0x1]
          %v268 = vlaneseq
          %v269 = vshrl.u32 %v268, 7
          %v270 = vsub.s32 0, %v269
          %v271 = vrot.slane %v266, %v270
          %272 = vset.pattern.permute.xlu0 0
          %273 = vperm.xlu0 %272, %v271
          %v274 = vpop.permute.xlu0 %273
          %276 = vst [vmem:[%s189] sm:$0xff] %v274
        $region36: #{tpu_custom_call.1} parent=27 // pred_fallthru
          _
        %s277 = sand.u32 %s100, 1
        %s278 = scalar_lea.sflag [#allocation4], %s277
        %s279 = sand.u32 %s100, 1
        %s280 = smul.addr %s279, 8
        %s281 = scalar_lea.vmem [#allocation3], %s280
        // Predicated region
        $region37: #{tpu_custom_call.1} parent=27 // pred_check
          %p282 = pneg %p110
        $region38: #{tpu_custom_call.1} parent=27 // pred_check_branch
          %284 = sbr.rel (%p282) target = $region40
        $region39: #{tpu_custom_call.1} parent=27 // pred_region
          %s286 = ssub.s32 128, 128
          %287 = vsyncadd %s278, %s286
          %s288 = smul.addr %s20, 128
          %s289 = scalar_lea.hbm %s2, %s288
          %s291 = sshll.u32 %s281, 4
          %s292 = int_to_ptr.vmem [resolvable:$true] %s291
          %294 = dma.vmem_to_hbm [thread:$0]  %s292, 128, %s289, %s278
        $region40: #{tpu_custom_call.1} parent=27 // pred_fallthru
          _
      $region28: #{tpu_custom_call.1} parent=5 // pred_fallthru
        _
      %p295 = scmp.le.s32.totalorder 2, %s11
      // Predicated region
      $region41: #{tpu_custom_call.1} parent=5 // pred_check
        %p296 = pneg %p295
      $region42: #{tpu_custom_call.1} parent=5 // pred_check_branch
        %298 = sbr.rel (%p296) target = $region44
      $region43: #{tpu_custom_call.1} parent=5 // pred_region
        %s299 = ssub.s32 %s11, 2
        // Predicated region
        $region45: #{tpu_custom_call.1} parent=43 // pred_check
          %p300 = pneg %p116
        $region46: #{tpu_custom_call.1} parent=43 // pred_check_branch
          %302 = sbr.rel (%p300) target = $region48
        $region47: #{tpu_custom_call.1} parent=43 // pred_region
          %s303 = sand.u32 %s101, 1
          %s304 = scalar_lea.sflag [#allocation4], %s303
          %s305 = sand.u32 %s101, 1
          %s306 = smul.addr %s305, 8
          %s307 = scalar_lea.vmem [#allocation3], %s306
          %308 = dma.done %s304, 128
        $region48: #{tpu_custom_call.1} parent=43 // pred_fallthru
          _
      $region44: #{tpu_custom_call.1} parent=5 // pred_fallthru
        _
    $region6: #{tpu_custom_call.1} parent=1 // loop_footer
      %s15 = sadd.s32 1, %s11
    $region7: #{tpu_custom_call.1} parent=1 // loop_footer_branch
      %10 = sbr.rel target = $region3
    $region8: #{tpu_custom_call.1} parent=1 // loop_exit
      _
    %309 = vsyncpa [#allocation4], 1
    %s310 = scalar_lea.sflag [#allocation4], 1
    %311 = vsyncpa %s310, 1

</llo_original>
